<compile_context>
chip_gen: v7x
topology: tpu7x:2x2x1
jax: 0.10.0
libtpu: 0.0.40
codegen_flags: <defaults>
</compile_context>

<pallas_src>
import jax
import jax.numpy as jnp
from jax.experimental import pallas as pl
from jax.experimental.pallas import tpu as pltpu


def _attention_kernel(x_ref, w1_ref, b1_ref, w2_ref, o_ref, m_sc, l_sc, acc_sc):
    """One (batch-tile, seq-tile) step of attention pooling with online softmax.

    x_ref  : [tb, ts, D] f32   input activations (current seq tile)
    w1_ref : [D, D]      bf16  first linear weight, stored [in, out]
    b1_ref : [1, D]      f32   first linear bias
    w2_ref : [1, D]      f32   second linear weight (row vector, out_features == 1)
    o_ref  : [tb, D]     f32   pooled output (written on the last seq step)
    m_sc   : [tb, 1, 1]  f32   running max of logits
    l_sc   : [tb, 1, 1]  f32   running softmax denominator
    acc_sc : [tb, D]     f32   running weighted sum of x
    """
    si = pl.program_id(1)

    @pl.when(si == 0)
    def _init():
        m_sc[...] = jnp.full_like(m_sc, -jnp.inf)
        l_sc[...] = jnp.zeros_like(l_sc)
        acc_sc[...] = jnp.zeros_like(acc_sc)

    x = x_ref[...]                                        # [tb, ts, D] f32
    tb, ts, d = x.shape

    # ---- logits: Linear(D->D) -> tanh -> Linear(D->1) ----------------------
    xf = x.reshape(tb * ts, d)                            # merge leading dims (free)
    h = jnp.tanh(
        jnp.dot(xf.astype(jnp.bfloat16), w1_ref[...],
                preferred_element_type=jnp.float32)       # bf16 MXU, f32 accumulate
        + b1_ref[...])                                    # [tb*ts, D] f32
    # D->1 linear as a lane reduction; logits stay a sublane column so no
    # lanes<->sublanes relayout is needed.  b2 omitted: softmax shift-invariant.
    logits = jnp.sum(h * w2_ref[...], axis=-1, keepdims=True)   # [tb*ts, 1]
    logits = logits.reshape(tb, ts, 1)                    # split leading dim (free)

    # ---- online softmax update over the sequence axis ----------------------
    m_prev = m_sc[...]                                            # [tb, 1, 1]
    m_new = jnp.maximum(m_prev, jnp.max(logits, axis=1, keepdims=True))
    alpha = jnp.exp(m_prev - m_new)                               # [tb, 1, 1]
    p = jnp.exp(logits - m_new)                                   # [tb, ts, 1]
    l_sc[...] = alpha * l_sc[...] + jnp.sum(p, axis=1, keepdims=True)
    acc_sc[...] = alpha[:, 0, :] * acc_sc[...] + jnp.sum(p * x, axis=1)
    m_sc[...] = m_new

    # ---- finalize: divide by denom, lane-dense [tb, D] store ----------------
    @pl.when(si == pl.num_programs(1) - 1)
    def _done():
        inv = pl.reciprocal(l_sc[...], approx=True)               # EUP slot
        o_ref[...] = (acc_sc[...] * inv[:, 0, :]).astype(o_ref.dtype)


def _choose_tiles(B, S, D, bytes_budget=20 << 20):
    """Pick (tb, ts) so the per-step working set fits `bytes_budget`.

    Per (batch, seq) row the kernel keeps ~8 f32 D-vectors alive
    (double-buffered x, bf16 cast, h, p*x, slack).  tb / ts are multiples of 8
    (or the full dim) to keep (8,128)-aligned blocks; biased towards
    tb*ts >= 256 rows/step (MXU fill) and >= 2 batch blocks (megacore).
    """
    row_bytes = 8 * D * 4
    const_bytes = 2 * (D * D * 2) + 8 * D * 4            # dbl-buffered bf16 W1, b1, w2
    rows_budget = max((bytes_budget - const_bytes) // row_bytes, 8)

    tb_cands = sorted({t for t in range(8, B + 1, 8) if B % t == 0} | {B})
    ts_cands = sorted({t for t in range(8, S + 1, 8) if S % t == 0} | {S})

    # Sequence tile: largest candidate that fits together with the smallest
    # batch tile (long sequences get tiled, short ones stay whole).
    tb = tb_cands[0]
    ts = ts_cands[0]
    for t in ts_cands:
        if tb * t <= rows_budget:
            ts = t
    # Batch tile: grow while it fits; once >= 256 rows/step are reached keep
    # at least two batch blocks so the "parallel" axis can shard across cores.
    for t in tb_cands:
        if t * ts > rows_budget:
            break
        if tb * ts >= 256 and B // t < 2:
            break
        tb = t
    return tb, ts


@jax.jit
def attention_forward(x, w1, b1, w2, b2=None):
    """x: [B,S,D] f32; w1: [D,D] ([in,out]); b1: [D]; w2: [D]; b2 ignored
    (softmax shift-invariant).  Returns [B, D] f32."""
    B, S, D = x.shape
    tb, ts = _choose_tiles(B, S, D)
    grid = (B // tb, S // ts)

    block_bytes = tb * ts * D * 4
    vmem_limit = int(8 * block_bytes            # x (double-buffered) + intermediates
                     + 2 * D * D * 2            # double-buffered bf16 W1
                     + 8 * D * 4                # b1 / w2
                     + 4 * tb * D * 4           # acc scratch + output block
                     + (2 << 20))               # slack
    vmem_limit = min(max(vmem_limit, 32 << 20), 64 << 20)

    return pl.pallas_call(
        _attention_kernel,
        out_shape=jax.ShapeDtypeStruct((B, D), jnp.float32),
        grid_spec=pltpu.PrefetchScalarGridSpec(
            num_scalar_prefetch=0,
            grid=grid,
            in_specs=[
                pl.BlockSpec((tb, ts, D), lambda i, j: (i, j, 0)),   # x tile
                pl.BlockSpec((D, D), lambda i, j: (0, 0)),           # W1 (bf16)
                pl.BlockSpec((1, D), lambda i, j: (0, 0)),           # b1
                pl.BlockSpec((1, D), lambda i, j: (0, 0)),           # W2 row
            ],
            out_specs=pl.BlockSpec((tb, D), lambda i, j: (i, 0)),
            scratch_shapes=[
                pltpu.VMEM((tb, 1, 1), jnp.float32),   # running max
                pltpu.VMEM((tb, 1, 1), jnp.float32),   # running denom
                pltpu.VMEM((tb, D), jnp.float32),      # running weighted sum
            ],
        ),
        compiler_params=pltpu.CompilerParams(
            dimension_semantics=("parallel", "arbitrary"),
            vmem_limit_bytes=vmem_limit),
    )(x, w1.astype(jnp.bfloat16), b1.reshape(1, D), w2.reshape(1, D))


def attention_reference(x, w1, b1, w2, b2):
    """Pure-JAX (f32) reference identical to the PyTorch module in eval mode."""
    h = jnp.tanh(x @ w1 + b1)                                    # [B, S, D]
    logits = jnp.sum(h * w2, axis=-1, keepdims=True) + b2        # [B, S, 1]
    attn = jax.nn.softmax(logits, axis=1)                        # softmax over seq
    return jnp.sum(x * attn, axis=1)                             # [B, D]


if __name__ == "__main__":
    B, S, D = 2, 8, 128
    key = jax.random.PRNGKey(0)
    kx, k1, k2, k3, k4 = jax.random.split(key, 5)
    x = jax.random.normal(kx, (B, S, D), dtype=jnp.float32)
    # PyTorch Linear weights are [out, in]; stored pre-transposed here as [in, out].
    w1 = 0.1 * jax.random.normal(k1, (D, D), dtype=jnp.float32)
    b1 = 0.1 * jax.random.normal(k2, (D,), dtype=jnp.float32)
    w2 = 0.1 * jax.random.normal(k3, (D,), dtype=jnp.float32)   # row of the [1, D] weight
    b2 = 0.1 * jax.random.normal(k4, (1,), dtype=jnp.float32)

    out = jax.block_until_ready(attention_forward(x, w1, b1, w2, b2))

    assert out.shape == (B, D) and out.dtype == jnp.float32
    assert bool(jnp.all(jnp.isfinite(out)))
    ref = attention_reference(x, w1, b1, w2, b2)
    err = float(jnp.max(jnp.abs(out - ref)))
    # bf16 matmul operands (f32 accumulation) + approx reciprocal contribute
    # a few 1e-3 of absolute error vs. the pure-f32 reference.
    assert err < 2e-2, f"mismatch vs. JAX reference: {err}"
    print("KERNEL_OK")
</pallas_src>

<mosaic_0001>
module attributes {stable_mosaic.version = 11 : i64} {
  func.func @_attention_kernel(%arg0: i32, %arg1: i32, %arg2: memref<2x8x128xf32, #tpu.memory_space<vmem>>, %arg3: memref<128x128xbf16, #tpu.memory_space<vmem>>, %arg4: memref<1x128xf32, #tpu.memory_space<vmem>>, %arg5: memref<1x128xf32, #tpu.memory_space<vmem>>, %arg6: memref<2x128xf32, #tpu.memory_space<vmem>>, %arg7: memref<2x1x1xf32, #tpu.memory_space<vmem>>, %arg8: memref<2x1x1xf32, #tpu.memory_space<vmem>>, %arg9: memref<2x128xf32, #tpu.memory_space<vmem>>) attributes {dimension_semantics = [#tpu.dimension_semantics<parallel>, #tpu.dimension_semantics<arbitrary>], iteration_bounds = array<i64: 1, 1>, scalar_prefetch = 0 : i64, scratch_operands = 3 : i64, tpu.core_type = #tpu.core_type<tc>, window_params = [{transform_indices = @transform_0, window_bounds = array<i64: 2, 8, 128>}, {pipeline_mode = #tpu.pipeline_mode<synchronous>, transform_indices = @transform_1, window_bounds = array<i64: 128, 128>}, {pipeline_mode = #tpu.pipeline_mode<synchronous>, transform_indices = @transform_2, window_bounds = array<i64: 1, 128>}, {pipeline_mode = #tpu.pipeline_mode<synchronous>, transform_indices = @transform_3, window_bounds = array<i64: 1, 128>}, {transform_indices = @transform_4, window_bounds = array<i64: 2, 128>}]} {
    %c0_i32 = arith.constant 0 : i32
    %0 = arith.cmpi eq, %arg1, %c0_i32 : i32
    %1 = arith.extui %0 : i1 to i32
    %c0_i32_0 = arith.constant 0 : i32
    %2 = arith.cmpi ne, %1, %c0_i32_0 : i32
    scf.if %2 {
      %cst_31 = arith.constant 0xFF800000 : f32
      %46 = vector.broadcast %cst_31 : f32 to vector<2x1x1xf32>
      %c0_32 = arith.constant 0 : index
      %c0_33 = arith.constant 0 : index
      %c0_34 = arith.constant 0 : index
      %47 = vector.load %arg7[%c0_32, %c0_33, %c0_34] : memref<2x1x1xf32, #tpu.memory_space<vmem>>, vector<2x1x1xf32>
      tpu.vector_store %arg7[%c0_32, %c0_33, %c0_34], %46 {strides = array<i32>} : memref<2x1x1xf32, #tpu.memory_space<vmem>>, vector<2x1x1xf32>,
      %cst_35 = arith.constant 0.000000e+00 : f32
      %48 = vector.broadcast %cst_35 : f32 to vector<2x1x1xf32>
      %c0_36 = arith.constant 0 : index
      %c0_37 = arith.constant 0 : index
      %c0_38 = arith.constant 0 : index
      %49 = vector.load %arg8[%c0_36, %c0_37, %c0_38] : memref<2x1x1xf32, #tpu.memory_space<vmem>>, vector<2x1x1xf32>
      tpu.vector_store %arg8[%c0_36, %c0_37, %c0_38], %48 {strides = array<i32>} : memref<2x1x1xf32, #tpu.memory_space<vmem>>, vector<2x1x1xf32>,
      %cst_39 = arith.constant 0.000000e+00 : f32
      %50 = vector.broadcast %cst_39 : f32 to vector<2x128xf32>
      %c0_40 = arith.constant 0 : index
      %c0_41 = arith.constant 0 : index
      %51 = vector.load %arg9[%c0_40, %c0_41] : memref<2x128xf32, #tpu.memory_space<vmem>>, vector<2x128xf32>
      tpu.vector_store %arg9[%c0_40, %c0_41], %50 {strides = array<i32>} : memref<2x128xf32, #tpu.memory_space<vmem>>, vector<2x128xf32>,
    } else {
    }
    %c0 = arith.constant 0 : index
    %c0_1 = arith.constant 0 : index
    %c0_2 = arith.constant 0 : index
    %3 = vector.load %arg2[%c0, %c0_1, %c0_2] : memref<2x8x128xf32, #tpu.memory_space<vmem>>, vector<2x8x128xf32>
    %4 = vector.shape_cast %3 : vector<2x8x128xf32> to vector<16x128xf32>
    %5 = arith.truncf %4 : vector<16x128xf32> to vector<16x128xbf16>
    %c0_3 = arith.constant 0 : index
    %c0_4 = arith.constant 0 : index
    %6 = vector.load %arg3[%c0_3, %c0_4] : memref<128x128xbf16, #tpu.memory_space<vmem>>, vector<128x128xbf16>
    %cst = arith.constant dense<0.000000e+00> : vector<16x128xf32>
    %7 = tpu.matmul %5, %6, %cst {dimension_numbers = #tpu.dot_dimension_numbers<[1], [0], [0], [1], [0, 0, 1, 1], [], []>} : vector<16x128xbf16>, vector<128x128xbf16>, vector<16x128xf32> -> vector<16x128xf32>
    %c0_5 = arith.constant 0 : index
    %c0_6 = arith.constant 0 : index
    %8 = vector.load %arg4[%c0_5, %c0_6] : memref<1x128xf32, #tpu.memory_space<vmem>>, vector<1x128xf32>
    %9 = vector.broadcast %8 : vector<1x128xf32> to vector<16x128xf32>
    %10 = arith.addf %7, %9 : vector<16x128xf32>
    %11 = math.tanh %10 : vector<16x128xf32>
    %c0_7 = arith.constant 0 : index
    %c0_8 = arith.constant 0 : index
    %12 = vector.load %arg5[%c0_7, %c0_8] : memref<1x128xf32, #tpu.memory_space<vmem>>, vector<1x128xf32>
    %13 = vector.broadcast %12 : vector<1x128xf32> to vector<16x128xf32>
    %14 = arith.mulf %11, %13 : vector<16x128xf32>
    %cst_9 = arith.constant dense<0.000000e+00> : vector<16xf32>
    %15 = vector.multi_reduction <add>, %14, %cst_9 [1] : vector<16x128xf32> to vector<16xf32>
    %16 = vector.shape_cast %15 : vector<16xf32> to vector<16x1xf32>
    %17 = vector.shape_cast %16 : vector<16x1xf32> to vector<2x8x1xf32>
    %c0_10 = arith.constant 0 : index
    %c0_11 = arith.constant 0 : index
    %c0_12 = arith.constant 0 : index
    %18 = vector.load %arg7[%c0_10, %c0_11, %c0_12] : memref<2x1x1xf32, #tpu.memory_space<vmem>>, vector<2x1x1xf32>
    %cst_13 = arith.constant dense<0xFF800000> : vector<2x1xf32>
    %19 = vector.multi_reduction <maximumf>, %17, %cst_13 [1] : vector<2x8x1xf32> to vector<2x1xf32>
    %20 = vector.shape_cast %19 : vector<2x1xf32> to vector<2x1x1xf32>
    %21 = arith.maximumf %18, %20 : vector<2x1x1xf32>
    %22 = arith.subf %18, %21 : vector<2x1x1xf32>
    %23 = math.exp %22 : vector<2x1x1xf32>
    %24 = vector.broadcast %21 : vector<2x1x1xf32> to vector<2x8x1xf32>
    %25 = arith.subf %17, %24 : vector<2x8x1xf32>
    %26 = math.exp %25 : vector<2x8x1xf32>
    %c0_14 = arith.constant 0 : index
    %c0_15 = arith.constant 0 : index
    %c0_16 = arith.constant 0 : index
    %27 = vector.load %arg8[%c0_14, %c0_15, %c0_16] : memref<2x1x1xf32, #tpu.memory_space<vmem>>, vector<2x1x1xf32>
    %28 = arith.mulf %23, %27 : vector<2x1x1xf32>
    %cst_17 = arith.constant dense<0.000000e+00> : vector<2x1xf32>
    %29 = vector.multi_reduction <add>, %26, %cst_17 [1] : vector<2x8x1xf32> to vector<2x1xf32>
    %30 = vector.shape_cast %29 : vector<2x1xf32> to vector<2x1x1xf32>
    %31 = arith.addf %28, %30 : vector<2x1x1xf32>
    %c0_18 = arith.constant 0 : index
    %c0_19 = arith.constant 0 : index
    %c0_20 = arith.constant 0 : index
    %32 = vector.load %arg8[%c0_18, %c0_19, %c0_20] : memref<2x1x1xf32, #tpu.memory_space<vmem>>, vector<2x1x1xf32>
    tpu.vector_store %arg8[%c0_18, %c0_19, %c0_20], %31 {strides = array<i32>} : memref<2x1x1xf32, #tpu.memory_space<vmem>>, vector<2x1x1xf32>,
    %33 = vector.shape_cast %23 : vector<2x1x1xf32> to vector<2x1xf32>
    %c0_21 = arith.constant 0 : index
    %c0_22 = arith.constant 0 : index
    %34 = vector.load %arg9[%c0_21, %c0_22] : memref<2x128xf32, #tpu.memory_space<vmem>>, vector<2x128xf32>
    %35 = vector.broadcast %33 : vector<2x1xf32> to vector<2x128xf32>
    %36 = arith.mulf %35, %34 : vector<2x128xf32>
    %37 = vector.broadcast %26 : vector<2x8x1xf32> to vector<2x8x128xf32>
    %38 = arith.mulf %37, %3 : vector<2x8x128xf32>
    %cst_23 = arith.constant dense<0.000000e+00> : vector<2x128xf32>
    %39 = vector.multi_reduction <add>, %38, %cst_23 [1] : vector<2x8x128xf32> to vector<2x128xf32>
    %40 = arith.addf %36, %39 : vector<2x128xf32>
    %c0_24 = arith.constant 0 : index
    %c0_25 = arith.constant 0 : index
    %41 = vector.load %arg9[%c0_24, %c0_25] : memref<2x128xf32, #tpu.memory_space<vmem>>, vector<2x128xf32>
    tpu.vector_store %arg9[%c0_24, %c0_25], %40 {strides = array<i32>} : memref<2x128xf32, #tpu.memory_space<vmem>>, vector<2x128xf32>,
    %c0_26 = arith.constant 0 : index
    %c0_27 = arith.constant 0 : index
    %c0_28 = arith.constant 0 : index
    %42 = vector.load %arg7[%c0_26, %c0_27, %c0_28] : memref<2x1x1xf32, #tpu.memory_space<vmem>>, vector<2x1x1xf32>
    tpu.vector_store %arg7[%c0_26, %c0_27, %c0_28], %21 {strides = array<i32>} : memref<2x1x1xf32, #tpu.memory_space<vmem>>, vector<2x1x1xf32>,
    %c0_i32_29 = arith.constant 0 : i32
    %43 = arith.cmpi eq, %arg1, %c0_i32_29 : i32
    %44 = arith.extui %43 : i1 to i32
    %c0_i32_30 = arith.constant 0 : i32
    %45 = arith.cmpi ne, %44, %c0_i32_30 : i32
    scf.if %45 {
      %c0_31 = arith.constant 0 : index
      %c0_32 = arith.constant 0 : index
      %c0_33 = arith.constant 0 : index
      %46 = vector.load %arg8[%c0_31, %c0_32, %c0_33] : memref<2x1x1xf32, #tpu.memory_space<vmem>>, vector<2x1x1xf32>
      %47 = tpu.reciprocal %46 {approx = true} : vector<2x1x1xf32> -> vector<2x1x1xf32>
      %c0_34 = arith.constant 0 : index
      %c0_35 = arith.constant 0 : index
      %48 = vector.load %arg9[%c0_34, %c0_35] : memref<2x128xf32, #tpu.memory_space<vmem>>, vector<2x128xf32>
      %49 = vector.shape_cast %47 : vector<2x1x1xf32> to vector<2x1xf32>
      %50 = vector.broadcast %49 : vector<2x1xf32> to vector<2x128xf32>
      %51 = arith.mulf %48, %50 : vector<2x128xf32>
      %c0_36 = arith.constant 0 : index
      %c0_37 = arith.constant 0 : index
      %52 = vector.load %arg6[%c0_36, %c0_37] : memref<2x128xf32, #tpu.memory_space<vmem>>, vector<2x128xf32>
      tpu.vector_store %arg6[%c0_36, %c0_37], %51 {strides = array<i32>} : memref<2x128xf32, #tpu.memory_space<vmem>>, vector<2x128xf32>,
    } else {
    }
    return
  }
  func.func @transform_0(%arg0: i32, %arg1: i32) -> (i32, i32, i32) {
    %c0_i32 = arith.constant 0 : i32
    %c0_i32_0 = arith.constant 0 : i32
    return %arg0, %arg1, %c0_i32 : i32, i32, i32
  }
  func.func @transform_1(%arg0: i32, %arg1: i32) -> (i32, i32) {
    %c0_i32 = arith.constant 0 : i32
    %c0_i32_0 = arith.constant 0 : i32
    %c0_i32_1 = arith.constant 0 : i32
    return %c0_i32, %c0_i32_0 : i32, i32
  }
  func.func @transform_2(%arg0: i32, %arg1: i32) -> (i32, i32) {
    %c0_i32 = arith.constant 0 : i32
    %c0_i32_0 = arith.constant 0 : i32
    %c0_i32_1 = arith.constant 0 : i32
    return %c0_i32, %c0_i32_0 : i32, i32
  }
  func.func @transform_3(%arg0: i32, %arg1: i32) -> (i32, i32) {
    %c0_i32 = arith.constant 0 : i32
    %c0_i32_0 = arith.constant 0 : i32
    %c0_i32_1 = arith.constant 0 : i32
    return %c0_i32, %c0_i32_0 : i32, i32
  }
  func.func @transform_4(%arg0: i32, %arg1: i32) -> (i32, i32) {
    %c0_i32 = arith.constant 0 : i32
    %c0_i32_0 = arith.constant 0 : i32
    return %arg0, %c0_i32 : i32, i32
  }
}

</mosaic_0001>

<llo_original>
// kernel: attention_forward.1
$region0: #{attention_forward.1}
  #allocation0 [shape = 'u32[]', space=smem, size = 0x4, offset = 0x4, fixed_abs, tag = 'smem constant byte address 0x4 - core index']
  #allocation1 [shape = 'u32[144,128]{1,0:T(1,128)}', space=vmem, size = 0x12000, scoped, tag = 'internal scratch']
  #allocation2 [shape = 'f32[2,1,1]{2,1,0:T(1,128)}', space=vmem, size = 0x400, scoped, tag = 'scratch operand']
  #allocation3 [shape = 'f32[2,1,1]{2,1,0:T(1,128)}', space=vmem, size = 0x400, scoped, tag = 'scratch operand']
  #allocation4 [shape = 'f32[2,128]{1,0:T(2,128)}', space=vmem, size = 0x400, scoped, tag = 'scratch operand']
  %s0 = inlined_call_operand.vmem [shape: f32[2,8,128], index: 0, kind: input, shape index: {}]
  %s1 = inlined_call_operand.vmem [shape: bf16[128,128], index: 1, kind: input, shape index: {}]
  %s2 = inlined_call_operand.vmem [shape: f32[1,128], index: 2, kind: input, shape index: {}]
  %s3 = inlined_call_operand.vmem [shape: f32[1,128], index: 3, kind: input, shape index: {}]
  %s4 = inlined_call_operand.hbm [shape: f32[2,128], index: 4, kind: output, shape index: {}]
  %s5 = sld [smem:[#allocation0]]
  $region34: #{attention_forward.1} parent=0
    _
  %s7 = ssub.s32 1, %s5
  %s8 = scalar_select 0, %s7, %s5
  $region1: #{attention_forward.1} parent=0
    #allocation5 [shape = 'u8[1024]{0}', space=vmem, size = 0x400, scoped, tag = 'output window, operand 0, single buffered']
    #allocation6 [shape = 's32[1]{0}', space=sflag, size = 0x4, scoped, tag = 'scoped memory for attention_forward.1']
    %9 = vsyncpa [#allocation6], 0
    // Predicated region
    $region2: #{attention_forward.1} parent=1 // pred_check
      _
    $region3: #{attention_forward.1} parent=1 // pred_check_branch
      %11 = sbr.rel (0) target = $region5
    $region4: #{attention_forward.1} parent=1 // pred_region
      _
    $region5: #{attention_forward.1} parent=1 // pred_fallthru
      _
    // Predicated region
    $region6: #{attention_forward.1} parent=1 // pred_check
      _
    $region7: #{attention_forward.1} parent=1 // pred_check_branch
      %13 = sbr.rel (0) target = $region9
    $region8: #{attention_forward.1} parent=1 // pred_region
      _
    $region9: #{attention_forward.1} parent=1 // pred_fallthru
      _
    // Predicated region
    $region10: #{attention_forward.1} parent=1 // pred_check
      _
    $region11: #{attention_forward.1} parent=1 // pred_check_branch
      %15 = sbr.rel (0) target = $region13
    $region12: #{attention_forward.1} parent=1 // pred_region
      _
    $region13: #{attention_forward.1} parent=1 // pred_fallthru
      _
    // Predicated region
    $region14: #{attention_forward.1} parent=1 // pred_check
      _
    $region15: #{attention_forward.1} parent=1 // pred_check_branch
      %17 = sbr.rel (0) target = $region17
    $region16: #{attention_forward.1} parent=1 // pred_region
      _
    $region17: #{attention_forward.1} parent=1 // pred_fallthru
      _
    %p19 = scmp.eq.s32.totalorder 0, 0
    // Predicated region
    $region18: #{attention_forward.1} parent=1 // pred_check
      %p20 = pneg %p19
    $region19: #{attention_forward.1} parent=1 // pred_check_branch
      %22 = sbr.rel (%p20) target = $region21
    $region20: #{attention_forward.1} parent=1 // pred_region
      %vm23 = vcmask 0
      %24 = vst.msk [vmem:[#allocation2] sm:$0x1] %vm23, -inf
      %25 = vst.msk [vmem:[#allocation2 + $0x1] sm:$0x1] %vm23, -inf
      %26 = vst.msk [vmem:[#allocation3] sm:$0x1] %vm23, 0.0
      %27 = vst.msk [vmem:[#allocation3 + $0x1] sm:$0x1] %vm23, 0.0
      %28 = vst [vmem:[#allocation4] sm:$0x3] 0.0
    $region21: #{attention_forward.1} parent=1 // pred_fallthru
      _
    %v29 = vld [vmem:[%s0] sm:$0xff]
    %v30 = vld [vmem:[%s0 + $0x8] sm:$0xff]
    %v31 = vpack.c.bf16 %v30, %v29
    %v32 = vld [vmem:[%s1] sm:$0xf]
    %v33 = vld [vmem:[%s1 + $0x4] sm:$0xf]
    %v34 = vld [vmem:[%s1 + $0x8] sm:$0xf]
    %v35 = vld [vmem:[%s1 + $0xc] sm:$0xf]
    %v36 = vld [vmem:[%s1 + $0x10] sm:$0xf]
    %v37 = vld [vmem:[%s1 + $0x14] sm:$0xf]
    %v38 = vld [vmem:[%s1 + $0x18] sm:$0xf]
    %v39 = vld [vmem:[%s1 + $0x1c] sm:$0xf]
    %v40 = vld [vmem:[%s1 + $0x20] sm:$0xf]
    %v41 = vld [vmem:[%s1 + $0x24] sm:$0xf]
    %v42 = vld [vmem:[%s1 + $0x28] sm:$0xf]
    %v43 = vld [vmem:[%s1 + $0x2c] sm:$0xf]
    %v44 = vld [vmem:[%s1 + $0x30] sm:$0xf]
    %v45 = vld [vmem:[%s1 + $0x34] sm:$0xf]
    %v46 = vld [vmem:[%s1 + $0x38] sm:$0xf]
    %v47 = vld [vmem:[%s1 + $0x3c] sm:$0xf]
    %v48 = vld [vmem:[%s2] sm:$0x1]
    %v50 = vlaneseq
    %v51 = vshrl.u32 %v50, 7
    %v52 = vsub.s32 0, %v51
    %v53 = vrot.slane %v48, %v52
    %v71 = vunpack.c.l.b16 %v32
    %v72 = vunpack.c.l.b16 %v33
    %v73 = vunpack.c.l.b16 %v34
    %v74 = vunpack.c.l.b16 %v35
    %v75 = vunpack.c.l.b16 %v36
    %v76 = vunpack.c.l.b16 %v37
    %v77 = vunpack.c.l.b16 %v38
    %v78 = vunpack.c.l.b16 %v39
    %v79 = vunpack.c.l.b16 %v40
    %v80 = vunpack.c.l.b16 %v41
    %v81 = vunpack.c.l.b16 %v42
    %v82 = vunpack.c.l.b16 %v43
    %v83 = vunpack.c.l.b16 %v44
    %v84 = vunpack.c.l.b16 %v45
    %v85 = vunpack.c.l.b16 %v46
    %v86 = vunpack.c.l.b16 %v47
    %v87 = vpack.c.b16 %v72, %v71
    %v88 = vpack.c.b16 %v74, %v73
    %v89 = vpack.c.b16 %v76, %v75
    %v90 = vpack.c.b16 %v78, %v77
    %v91 = vpack.c.b16 %v80, %v79
    %v92 = vpack.c.b16 %v82, %v81
    %v93 = vpack.c.b16 %v84, %v83
    %v94 = vpack.c.b16 %v86, %v85
    %103 = vmatprep.subr.bf16.mxu0 0
    %104 = vmatpush1.bf16.msra.mxu0 %v87
    %105 = vmatprep.subr.bf16.mxu0 0
    %106 = vmatpush1.bf16.msra.mxu0 %v88
    %107 = vmatprep.subr.bf16.mxu0 0
    %108 = vmatpush1.bf16.msra.mxu0 %v89
    %109 = vmatprep.subr.bf16.mxu0 0
    %110 = vmatpush1.bf16.msra.mxu0 %v90
    %111 = vmatprep.subr.bf16.mxu0 0
    %112 = vmatpush1.bf16.msra.mxu0 %v91
    %113 = vmatprep.subr.bf16.mxu0 0
    %114 = vmatpush1.bf16.msra.mxu0 %v92
    %115 = vmatprep.subr.bf16.mxu0 0
    %116 = vmatpush1.bf16.msra.mxu0 %v93
    %117 = vmatprep.subr.bf16.mxu0 0
    %118 = vmatpush1.bf16.msra.mxu0 %v94
    %119 = vmatprep.subr.bf16.mxu0 0
    %120 = vmatpush1.bf16.msra.mxu0 0
    %121 = vmatprep.subr.bf16.mxu0 0
    %122 = vmatpush1.bf16.msra.mxu0 0
    %123 = vmatprep.subr.bf16.mxu0 0
    %124 = vmatpush1.bf16.msra.mxu0 0
    %125 = vmatprep.subr.bf16.mxu0 0
    %126 = vmatpush1.bf16.msra.mxu0 0
    %127 = vmatprep.subr.bf16.mxu0 0
    %128 = vmatpush1.bf16.msra.mxu0 0
    %129 = vmatprep.subr.bf16.mxu0 0
    %130 = vmatpush1.bf16.msra.mxu0 0
    %131 = vmatprep.subr.bf16.mxu0 0
    %132 = vmatpush1.bf16.msra.mxu0 0
    %133 = vmatprep.subr.bf16.mxu0 0
    %134 = vmatpush1.bf16.msra.mxu0 0
    %135 = vmatprep.mubr.bf16.mxu0 0
    %136 = vmatmul.mubr.bf16.gmra.mrb[0].mxu0 %v31
    %v137 = vpop.f32.mrb[0].mxu0
    %v138 = vadd.f32 %v53, %v137
    %v139 = vpop.f32.mrb[0].mxu0
    %v140 = vpop.f32.mrb[0].mxu0
    %v141 = vadd.f32 %v53, %v140
    %v142 = vpop.f32.mrb[0].mxu0
    %143 = vdwg.mxu0
    %v144 = vtanh.pop %v138
    %v145 = vtanh.pop %v141
    %v146 = vld [vmem:[%s3] sm:$0x1]
    %v148 = vlaneseq
    %v149 = vshrl.u32 %v148, 7
    %v150 = vsub.s32 0, %v149
    %v151 = vrot.slane %v146, %v150
    %v153 = vmul.f32 %v144, %v151
    %v154 = vmul.f32 %v145, %v151
    %155 = vadd.xlane.f32.xlu0 %v153
    %v156 = vpop.xlane.xlu0 %155
    %157 = vadd.xlane.f32.xlu0 %v154
    %v158 = vpop.xlane.xlu0 %157
    %v159 = vld [vmem:[#allocation2] sm:$0x1]
    %v160 = vld [vmem:[#allocation2 + $0x1] sm:$0x1]
    %v161 = vrot.slane %v156, 4
    %v162 = vmax.f32 %v156, %v161
    %v163 = vrot.slane %v162, 2
    %v164 = vmax.f32 %v162, %v163
    %v165 = vrot.slane %v164, 1
    %v166 = vmax.f32 %v164, %v165
    %v167 = vrot.slane %v158, 4
    %v168 = vmax.f32 %v158, %v167
    %v169 = vrot.slane %v168, 2
    %v170 = vmax.f32 %v168, %v169
    %v171 = vrot.slane %v170, 1
    %v172 = vmax.f32 %v170, %v171
    %v173 = vmax.f32 %v159, %v166
    %v174 = vmax.f32 %v160, %v172
    %v175 = vsub.f32 %v159, %v173
    %v176 = vsub.f32 %v160, %v174
    %v177 = vmul.f32 %v175, 1.442695
    %v178 = vpow.pop %v177
    %v179 = vmul.f32 %v176, 1.442695
    %v180 = vpow.pop %v179
    %v183 = vlaneseq
    %v184 = vshrl.u32 %v183, 7
    %v185 = vsub.s32 0, %v184
    %v186 = vrot.slane %v173, %v185
    %v187 = vlaneseq
    %v188 = vshrl.u32 %v187, 7
    %v189 = vsub.s32 0, %v188
    %v190 = vrot.slane %v174, %v189
    %v193 = vsub.f32 %v156, %v186
    %v194 = vsub.f32 %v158, %v190
    %v195 = vmul.f32 %v193, 1.442695
    %v196 = vpow.pop %v195
    %v197 = vmul.f32 %v194, 1.442695
    %v198 = vpow.pop %v197
    %v199 = vld [vmem:[#allocation3] sm:$0x1]
    %v200 = vld [vmem:[#allocation3 + $0x1] sm:$0x1]
    %v201 = vmul.f32 %v178, %v199
    %v202 = vmul.f32 %v180, %v200
    %vm203 = vcmask 7168
    %v204 = vsel %vm203, %v196, 0.0
    %v205 = vrot.slane %v204, 4
    %v206 = vadd.f32 %v204, %v205
    %v207 = vrot.slane %v206, 2
    %v208 = vadd.f32 %v206, %v207
    %v209 = vrot.slane %v208, 1
    %v210 = vadd.f32 %v208, %v209
    %v211 = vsel %vm203, %v198, 0.0
    %v212 = vrot.slane %v211, 4
    %v213 = vadd.f32 %v211, %v212
    %v214 = vrot.slane %v213, 2
    %v215 = vadd.f32 %v213, %v214
    %v216 = vrot.slane %v215, 1
    %v217 = vadd.f32 %v215, %v216
    %v218 = vadd.f32 %v201, %v210
    %v219 = vadd.f32 %v202, %v217
    %vm220 = vcmask 0
    %221 = vst.msk [vmem:[#allocation3] sm:$0x1] %vm220, %v218
    %222 = vst.msk [vmem:[#allocation3 + $0x1] sm:$0x1] %vm220, %v219
    %v223 = vld [vmem:[#allocation4] sm:$0x3]
    %225 = vset.pattern.permute.xlu0 0
    %226 = vperm.xlu0 %225, %v178
    %v227 = vpop.permute.xlu0 %226
    %v229 = vlaneseq
    %v230 = vshrl.u32 %v229, 7
    %v231 = vsub.s32 0, %v230
    %v232 = vrot.slane %v227, %v231
    %234 = vset.pattern.permute.xlu0 0
    %235 = vperm.xlu0 %234, %v180
    %v236 = vpop.permute.xlu0 %235
    %v238 = vlaneseq
    %v239 = vshrl.u32 %v238, 7
    %v240 = vsub.s32 0, %v239
    %v241 = vrot.slane %v236, %v240
    %v244 = vunpack.c.l.s4 1966171168
    %v245 = vunpack.c.0.s8 %v244
    %v246 = vlaneseq
    %v247 = vshrl.u32 %v246, 7
    %v248 = vsub.s32 %v245, %v247
    %v249 = vrot.slane %v223, %v248
    %v250 = vcombine.high %v249, %v249
    %v252 = vunpack.c.l.s4 1966171168
    %v253 = vunpack.c.0.s8 %v252
    %v254 = vlaneseq
    %v255 = vshrl.u32 %v254, 7
    %v256 = vsub.s32 %v253, %v255
    %v257 = vrot.slane %v249, %v256
    %v259 = vunpack.c.l.s4 1966171168
    %v260 = vunpack.c.0.s8 %v259
    %v261 = vlaneseq
    %v262 = vshrl.u32 %v261, 7
    %v263 = vsub.s32 %v260, %v262
    %v264 = vrot.slane %v250, %v263
    %v267 = vmul.f32 %v232, %v257
    %v268 = vmul.f32 %v241, %v264
    %270 = vset.pattern.permute.xlu0 0
    %271 = vperm.xlu0 %270, %v196
    %v272 = vpop.permute.xlu0 %271
    %275 = vset.pattern.permute.xlu0 0
    %276 = vperm.xlu0 %275, %v198
    %v277 = vpop.permute.xlu0 %276
    %v279 = vmul.f32 %v272, %v29
    %v280 = vmul.f32 %v277, %v30
    %v281 = vrot.slane %v279, 4
    %v282 = vadd.f32 %v279, %v281
    %v283 = vrot.slane %v282, 2
    %v284 = vadd.f32 %v282, %v283
    %v285 = vrot.slane %v284, 1
    %v286 = vadd.f32 %v284, %v285
    %v287 = vrot.slane %v280, 4
    %v288 = vadd.f32 %v280, %v287
    %v289 = vrot.slane %v288, 2
    %v290 = vadd.f32 %v288, %v289
    %v291 = vrot.slane %v290, 1
    %v292 = vadd.f32 %v290, %v291
    %v296 = vunpack.c.l.s4 1966171168
    %v297 = vunpack.c.0.s8 %v296
    %v298 = vlaneseq
    %v299 = vshrl.u32 %v298, 7
    %v300 = vsub.s32 %v297, %v299
    %v301 = vrot.slane %v286, %v300
    %v303 = vunpack.c.l.s4 1966171168
    %v304 = vunpack.c.0.s8 %v303
    %v305 = vlaneseq
    %v306 = vshrl.u32 %v305, 7
    %v307 = vsub.s32 %v304, %v306
    %v308 = vrot.slane %v301, %v307
    %v310 = vunpack.c.l.s4 1966171168
    %v311 = vunpack.c.0.s8 %v310
    %v312 = vlaneseq
    %v313 = vshrl.u32 %v312, 7
    %v314 = vsub.s32 %v311, %v313
    %v315 = vrot.slane %v292, %v314
    %v317 = vunpack.c.l.s4 1966171168
    %v318 = vunpack.c.0.s8 %v317
    %v319 = vlaneseq
    %v320 = vshrl.u32 %v319, 7
    %v321 = vsub.s32 %v318, %v320
    %v322 = vrot.slane %v315, %v321
    %v325 = vadd.f32 %v267, %v308
    %v326 = vadd.f32 %v268, %v322
    %v329 = vcombine.low %v325, %v326
    %v331 = vunpack.c.l.s4 1966171168
    %v332 = vunpack.c.0.s8 %v331
    %v333 = vlaneseq
    %v334 = vshrl.u32 %v333, 7
    %v335 = vsub.s32 %v332, %v334
    %v336 = vrot.slane %v329, %v335
    %v338 = vunpack.c.l.s4 1966171168
    %v339 = vunpack.c.0.s8 %v338
    %v340 = vlaneseq
    %v341 = vshrl.u32 %v340, 7
    %v342 = vsub.s32 %v339, %v341
    %v343 = vrot.slane %v336, %v342
    %345 = vst [vmem:[#allocation4] sm:$0x3] %v343
    %346 = vst.msk [vmem:[#allocation2] sm:$0x1] %vm220, %v173
    %347 = vst.msk [vmem:[#allocation2 + $0x1] sm:$0x1] %vm220, %v174
    // Predicated region
    $region22: #{attention_forward.1} parent=1 // pred_check
      %p348 = pneg %p19
    $region23: #{attention_forward.1} parent=1 // pred_check_branch
      %350 = sbr.rel (%p348) target = $region25
    $region24: #{attention_forward.1} parent=1 // pred_region
      %v351 = vld [vmem:[#allocation3] sm:$0x1]
      %v352 = vld [vmem:[#allocation3 + $0x1] sm:$0x1]
      %v353 = vrcp.pop %v351
      %v354 = vrcp.pop %v352
      %v355 = vld [vmem:[#allocation4] sm:$0x3]
      %357 = vset.pattern.permute.xlu0 0
      %358 = vperm.xlu0 %357, %v353
      %v359 = vpop.permute.xlu0 %358
      %v361 = vlaneseq
      %v362 = vshrl.u32 %v361, 7
      %v363 = vsub.s32 0, %v362
      %v364 = vrot.slane %v359, %v363
      %366 = vset.pattern.permute.xlu0 0
      %367 = vperm.xlu0 %366, %v354
      %v368 = vpop.permute.xlu0 %367
      %v370 = vlaneseq
      %v371 = vshrl.u32 %v370, 7
      %v372 = vsub.s32 0, %v371
      %v373 = vrot.slane %v368, %v372
      %v376 = vcombine.low %v364, %v373
      %v378 = vunpack.c.l.s4 1966171168
      %v379 = vunpack.c.0.s8 %v378
      %v380 = vlaneseq
      %v381 = vshrl.u32 %v380, 7
      %v382 = vsub.s32 %v379, %v381
      %v383 = vrot.slane %v376, %v382
      %v385 = vunpack.c.l.s4 1966171168
      %v386 = vunpack.c.0.s8 %v385
      %v387 = vlaneseq
      %v388 = vshrl.u32 %v387, 7
      %v389 = vsub.s32 %v386, %v388
      %v390 = vrot.slane %v383, %v389
      %v392 = vmul.f32 %v355, %v390
      %393 = vst [vmem:[#allocation5] sm:$0x3] %v392
    $region25: #{attention_forward.1} parent=1 // pred_fallthru
      _
    // Predicated region
    $region26: #{attention_forward.1} parent=1 // pred_check
      _
    $region27: #{attention_forward.1} parent=1 // pred_check_branch
      %395 = sbr.rel (0) target = $region29
    $region28: #{attention_forward.1} parent=1 // pred_region
      %s397 = ssub.s32 32, 32
      %398 = vsyncadd [#allocation6], %s397
      %s400 = sshll.u32 [#allocation5], 4
      %s401 = int_to_ptr.vmem [resolvable:$true] %s400
      %403 = dma.vmem_to_hbm [thread:$0]  %s401, 32, %s4, [#allocation6]
    $region29: #{attention_forward.1} parent=1 // pred_fallthru
      _
    // Predicated region
    $region30: #{attention_forward.1} parent=1 // pred_check
      _
    $region31: #{attention_forward.1} parent=1 // pred_check_branch
      %405 = sbr.rel (0) target = $region33
    $region32: #{attention_forward.1} parent=1 // pred_region
      %406 = dma.done [#allocation6], 32
    $region33: #{attention_forward.1} parent=1 // pred_fallthru
      _
    %407 = vsyncpa [#allocation6], 1

</llo_original>
